<compile_context>
chip_gen: v7x
topology: tpu7x:2x2x1
jax: 0.10.0
libtpu: 0.0.40
codegen_flags: <defaults>
</compile_context>

<pallas_src>
import functools

import jax
import jax.numpy as jnp
from jax.experimental import pallas as pl
from jax.experimental.pallas import tpu as pltpu

HIDDEN = 64
EPS = 1e-5
SUB_ROWS = 2048          # inner row sub-tile: bounds the f32 (SUB_ROWS, 64) temps
MAX_BLOCK_B = 16384      # per-grid-step row cap (v7x-safe with 32 MiB scoped VMEM)
X_TILE_BUDGET = 8 << 20  # ~8 MiB budget for the double-buffered f32 x tile


def _round_up(x: int, m: int) -> int:
    return -(-x // m) * m


def _mlp_kernel(x_ref, w1_ref, b1_ref, w2_ref, b2_ref, w3_ref, b3_ref, o_ref,
                *, sub_rows, num_sub):
    """Fused 3-layer MLP on one (block_b, D_in) row tile.

    The block is processed in `num_sub` static sub-tiles of `sub_rows` rows so
    the f32 intermediates stay small no matter how big the DMA tile is.
    """

    def compute(xs):  # xs: (sub_rows, D_in) f32
        h1 = jnp.dot(xs, w1_ref[...], preferred_element_type=jnp.float32)
        h1 = jnp.maximum(h1 + b1_ref[...], 0.0)
        # BatchNorm1 is folded into (W2, b2) at parameter-prep time.
        h2 = jnp.dot(h1, w2_ref[...], preferred_element_type=jnp.float32)
        h2 = jnp.maximum(h2 + b2_ref[...], 0.0)
        # BatchNorm2 folded into (w3, b3); dropout (eval) == identity.
        # Output layer has a single unit: VPU multiply + cross-lane (XLU)
        # reduce instead of an N=1 MXU pass; result is lane-dense (1, sub).
        return jnp.sum(h2 * w3_ref[...], axis=-1)[None, :] + b3_ref[...]

    if num_sub == 1:
        o_ref[...] = compute(x_ref[...]).astype(o_ref.dtype)
    else:
        # Static Python loop -> static, 128-aligned slices (zero-cost views).
        for s in range(num_sub):
            r0 = s * sub_rows
            o_ref[:, r0:r0 + sub_rows] = compute(
                x_ref[r0:r0 + sub_rows, :]).astype(o_ref.dtype)


def _choose_block_b(B: int, d_in: int) -> int:
    """Rows per grid step.

    Targets a few MiB of f32 x per step (amortizing the ~0.35 us/step
    overhead), stays inside every generation's scoped-VMEM budget, and at
    large B prefers an even step count so both v7x TensorCores get equal work
    via the 'parallel' grid axis.
    """
    cap = min(MAX_BLOCK_B,
              max(SUB_ROWS,
                  (X_TILE_BUDGET // (2 * 4 * d_in)) // SUB_ROWS * SUB_ROWS))
    if B < 128:
        return B                                # full-array block (always legal)
    if B <= SUB_ROWS:
        return _round_up(B, 128)                # one step, lane-dense output
    if B <= cap:
        return _round_up(B, SUB_ROWS)           # one step, inner sub-tiling
    best_bb, best_key = None, None
    for bb in range(SUB_ROWS, cap + 1, SUB_ROWS):
        nb = -(-B // bb)
        key = (nb % 2, nb, nb * bb - B)         # even steps, fewest, least pad
        if best_key is None or key < best_key:
            best_key, best_bb = key, bb
    return best_bb


@jax.jit
def binary_nn_forward(x, params):
    """x: (B, D_in) float32.  params: folded kernel params (see fold_params)."""
    B, d_in = x.shape
    block_b = _choose_block_b(B, d_in)
    sub = min(block_b, SUB_ROWS)
    num_sub = block_b // sub
    nb = pl.cdiv(B, block_b)

    kernel = functools.partial(_mlp_kernel, sub_rows=sub, num_sub=num_sub)

    full2d = lambda shape: pl.BlockSpec(shape, lambda i: (0, 0))
    in_specs = [
        pl.BlockSpec((block_b, d_in), lambda i: (i, 0)),   # x (f32, streamed as-is)
        full2d((d_in, HIDDEN)),                            # W1       (f32)
        full2d((1, HIDDEN)),                               # b1       (f32)
        full2d((HIDDEN, HIDDEN)),                          # W2'      (f32)
        full2d((1, HIDDEN)),                               # b2'      (f32)
        full2d((1, HIDDEN)),                               # w3 row   (f32)
        full2d((1, 1)),                                    # b3'      (f32)
    ]
    # Lane-dense output: one (1, block_b) tile per grid step; the leading
    # block-index dimension is squeezed out inside the kernel.
    out_spec = pl.BlockSpec((None, 1, block_b), lambda i: (i, 0, 0))

    out = pl.pallas_call(
        kernel,
        out_shape=jax.ShapeDtypeStruct((nb, 1, block_b), jnp.float32),
        grid_spec=pltpu.PrefetchScalarGridSpec(
            num_scalar_prefetch=0,
            grid=(nb,),
            in_specs=in_specs,
            out_specs=out_spec,
        ),
        compiler_params=pltpu.CompilerParams(
            dimension_semantics=("parallel",),
            vmem_limit_bytes=32 * 1024 * 1024),
    )(x, params["w1"], params["b1"], params["w2"], params["b2"],
      params["w3"], params["b3"])

    # (nb, 1, block_b) -> (B, 1); rows past B (padded last block) are dropped.
    return out.reshape(nb * block_b, 1)[:B]


def init_params(key, d_in):
    """Raw f32 parameters mirroring nn.Linear default init
    (U(-1/sqrt(fan_in), +1/sqrt(fan_in))) and a freshly constructed
    BatchNorm1d (gamma=1, beta=0, running_mean=0, running_var=1)."""
    ks = jax.random.split(key, 6)

    def linear(kw, kb, fan_in, fan_out):
        bound = 1.0 / jnp.sqrt(fan_in)
        w = jax.random.uniform(kw, (fan_in, fan_out), jnp.float32, -bound, bound)
        b = jax.random.uniform(kb, (1, fan_out), jnp.float32, -bound, bound)
        return w, b

    w1, b1 = linear(ks[0], ks[1], d_in, HIDDEN)
    w2, b2 = linear(ks[2], ks[3], HIDDEN, HIDDEN)
    w3, b3 = linear(ks[4], ks[5], HIDDEN, 1)

    gamma = jnp.ones((1, HIDDEN), jnp.float32)
    beta = jnp.zeros((1, HIDDEN), jnp.float32)
    mean = jnp.zeros((1, HIDDEN), jnp.float32)
    var = jnp.ones((1, HIDDEN), jnp.float32)
    scale = gamma / jnp.sqrt(var + EPS)          # (1, HIDDEN)
    shift = beta - mean * scale                  # (1, HIDDEN)

    return {
        "w1": w1, "b1": b1, "bn1_scale": scale, "bn1_shift": shift,
        "w2": w2, "b2": b2, "bn2_scale": scale, "bn2_shift": shift,
        "w3": w3, "b3": b3,
    }


def fold_params(p):
    """One-time parameter preprocessing: fold eval-mode BatchNorm into the
    downstream linear layers.  Everything stays f32 (matmuls are tiny; the
    kernel is HBM/step-overhead bound, so f32 dots cost nothing).
      BN(h) @ W + b = h @ (diag(s) W) + (t @ W + b)
    """
    s1, t1 = p["bn1_scale"], p["bn1_shift"]              # (1, H)
    s2, t2 = p["bn2_scale"], p["bn2_shift"]              # (1, H)

    w2 = p["w2"] * s1.reshape(HIDDEN, 1)                 # scale rows of W2
    b2 = t1 @ p["w2"] + p["b2"]                          # (1, H)

    w3_row = p["w3"].reshape(1, HIDDEN) * s2             # output weights as row
    b3 = (t2 * p["w3"].reshape(1, HIDDEN)).sum(axis=-1, keepdims=True) + p["b3"]

    return {
        "w1": p["w1"], "b1": p["b1"],
        "w2": w2, "b2": b2,
        "w3": w3_row, "b3": b3,
    }


def _reference(x, p):
    """Pure-f32, unfolded reference matching the PyTorch eval forward."""
    h1 = jnp.maximum(x @ p["w1"] + p["b1"], 0.0)
    h1 = h1 * p["bn1_scale"] + p["bn1_shift"]
    h2 = jnp.maximum(h1 @ p["w2"] + p["b2"], 0.0)
    h2 = h2 * p["bn2_scale"] + p["bn2_shift"]
    return h2 @ p["w3"] + p["b3"]


if __name__ == "__main__":
    key = jax.random.PRNGKey(0)
    k_x, k_p = jax.random.split(key)

    B, D_in = 16, 32                      # data_shape = (B, D_in)
    x = jax.random.normal(k_x, (B, D_in), jnp.float32)
    raw_params = init_params(k_p, D_in)
    params = fold_params(raw_params)

    out = binary_nn_forward(x, params)
    out = jax.block_until_ready(out)

    ref = _reference(x, raw_params)
    assert out.shape == (B, 1)
    assert jnp.allclose(out, ref, atol=1e-2, rtol=1e-2), \
        float(jnp.max(jnp.abs(out - ref)))

    print("KERNEL_OK")
</pallas_src>

<mosaic_0001>
module attributes {stable_mosaic.version = 11 : i64} {
  func.func @_mlp_kernel(%arg0: i32, %arg1: memref<16x32xf32, #tpu.memory_space<vmem>>, %arg2: memref<32x64xf32, #tpu.memory_space<vmem>>, %arg3: memref<1x64xf32, #tpu.memory_space<vmem>>, %arg4: memref<64x64xf32, #tpu.memory_space<vmem>>, %arg5: memref<1x64xf32, #tpu.memory_space<vmem>>, %arg6: memref<1x64xf32, #tpu.memory_space<vmem>>, %arg7: memref<1x1xf32, #tpu.memory_space<vmem>>, %arg8: memref<1x1x16xf32, #tpu.memory_space<vmem>>) attributes {dimension_semantics = [#tpu.dimension_semantics<parallel>], iteration_bounds = array<i64: 1>, scalar_prefetch = 0 : i64, scratch_operands = 0 : i64, tpu.core_type = #tpu.core_type<tc>, window_params = [{transform_indices = @transform_0, window_bounds = array<i64: 16, 32>}, {pipeline_mode = #tpu.pipeline_mode<synchronous>, transform_indices = @transform_1, window_bounds = array<i64: 32, 64>}, {pipeline_mode = #tpu.pipeline_mode<synchronous>, transform_indices = @transform_2, window_bounds = array<i64: 1, 64>}, {pipeline_mode = #tpu.pipeline_mode<synchronous>, transform_indices = @transform_3, window_bounds = array<i64: 64, 64>}, {pipeline_mode = #tpu.pipeline_mode<synchronous>, transform_indices = @transform_4, window_bounds = array<i64: 1, 64>}, {pipeline_mode = #tpu.pipeline_mode<synchronous>, transform_indices = @transform_5, window_bounds = array<i64: 1, 64>}, {pipeline_mode = #tpu.pipeline_mode<synchronous>, transform_indices = @transform_6, window_bounds = array<i64: 1, 1>}, {transform_indices = @transform_7, window_bounds = array<i64: 1, 1, 16>}]} {
    %c0 = arith.constant 0 : index
    %c0_0 = arith.constant 0 : index
    %0 = vector.load %arg1[%c0, %c0_0] : memref<16x32xf32, #tpu.memory_space<vmem>>, vector<16x32xf32>
    %c0_1 = arith.constant 0 : index
    %c0_2 = arith.constant 0 : index
    %1 = vector.load %arg2[%c0_1, %c0_2] : memref<32x64xf32, #tpu.memory_space<vmem>>, vector<32x64xf32>
    %cst = arith.constant dense<0.000000e+00> : vector<16x64xf32>
    %2 = tpu.matmul %0, %1, %cst {dimension_numbers = #tpu.dot_dimension_numbers<[1], [0], [0], [1], [0, 0, 1, 1], [], []>} : vector<16x32xf32>, vector<32x64xf32>, vector<16x64xf32> -> vector<16x64xf32>
    %c0_3 = arith.constant 0 : index
    %c0_4 = arith.constant 0 : index
    %3 = vector.load %arg3[%c0_3, %c0_4] : memref<1x64xf32, #tpu.memory_space<vmem>>, vector<1x64xf32>
    %4 = vector.broadcast %3 : vector<1x64xf32> to vector<16x64xf32>
    %5 = arith.addf %2, %4 : vector<16x64xf32>
    %cst_5 = arith.constant 0.000000e+00 : f32
    %6 = vector.broadcast %cst_5 : f32 to vector<16x64xf32>
    %7 = arith.maximumf %5, %6 : vector<16x64xf32>
    %c0_6 = arith.constant 0 : index
    %c0_7 = arith.constant 0 : index
    %8 = vector.load %arg4[%c0_6, %c0_7] : memref<64x64xf32, #tpu.memory_space<vmem>>, vector<64x64xf32>
    %cst_8 = arith.constant dense<0.000000e+00> : vector<16x64xf32>
    %9 = tpu.matmul %7, %8, %cst_8 {dimension_numbers = #tpu.dot_dimension_numbers<[1], [0], [0], [1], [0, 0, 1, 1], [], []>} : vector<16x64xf32>, vector<64x64xf32>, vector<16x64xf32> -> vector<16x64xf32>
    %c0_9 = arith.constant 0 : index
    %c0_10 = arith.constant 0 : index
    %10 = vector.load %arg5[%c0_9, %c0_10] : memref<1x64xf32, #tpu.memory_space<vmem>>, vector<1x64xf32>
    %11 = vector.broadcast %10 : vector<1x64xf32> to vector<16x64xf32>
    %12 = arith.addf %9, %11 : vector<16x64xf32>
    %cst_11 = arith.constant 0.000000e+00 : f32
    %13 = vector.broadcast %cst_11 : f32 to vector<16x64xf32>
    %14 = arith.maximumf %12, %13 : vector<16x64xf32>
    %c0_12 = arith.constant 0 : index
    %c0_13 = arith.constant 0 : index
    %15 = vector.load %arg6[%c0_12, %c0_13] : memref<1x64xf32, #tpu.memory_space<vmem>>, vector<1x64xf32>
    %16 = vector.broadcast %15 : vector<1x64xf32> to vector<16x64xf32>
    %17 = arith.mulf %14, %16 : vector<16x64xf32>
    %cst_14 = arith.constant dense<0.000000e+00> : vector<16xf32>
    %18 = vector.multi_reduction <add>, %17, %cst_14 [1] : vector<16x64xf32> to vector<16xf32>
    %19 = vector.shape_cast %18 : vector<16xf32> to vector<1x16xf32>
    %c0_15 = arith.constant 0 : index
    %c0_16 = arith.constant 0 : index
    %20 = vector.load %arg7[%c0_15, %c0_16] : memref<1x1xf32, #tpu.memory_space<vmem>>, vector<1x1xf32>
    %21 = vector.broadcast %20 : vector<1x1xf32> to vector<1x16xf32>
    %22 = arith.addf %19, %21 : vector<1x16xf32>
    %c0_17 = arith.constant 0 : index
    %c0_18 = arith.constant 0 : index
    %c0_19 = arith.constant 0 : index
    %23 = vector.load %arg8[%c0_17, %c0_18, %c0_19] : memref<1x1x16xf32, #tpu.memory_space<vmem>>, vector<1x1x16xf32>
    %24 = vector.shape_cast %23 : vector<1x1x16xf32> to vector<1x16xf32>
    %25 = vector.shape_cast %22 : vector<1x16xf32> to vector<1x1x16xf32>
    tpu.vector_store %arg8[%c0_17, %c0_18, %c0_19], %25 {strides = array<i32>} : memref<1x1x16xf32, #tpu.memory_space<vmem>>, vector<1x1x16xf32>,
    return
  }
  func.func @transform_0(%arg0: i32) -> (i32, i32) {
    %c0_i32 = arith.constant 0 : i32
    %c0_i32_0 = arith.constant 0 : i32
    return %arg0, %c0_i32 : i32, i32
  }
  func.func @transform_1(%arg0: i32) -> (i32, i32) {
    %c0_i32 = arith.constant 0 : i32
    %c0_i32_0 = arith.constant 0 : i32
    %c0_i32_1 = arith.constant 0 : i32
    return %c0_i32, %c0_i32_0 : i32, i32
  }
  func.func @transform_2(%arg0: i32) -> (i32, i32) {
    %c0_i32 = arith.constant 0 : i32
    %c0_i32_0 = arith.constant 0 : i32
    %c0_i32_1 = arith.constant 0 : i32
    return %c0_i32, %c0_i32_0 : i32, i32
  }
  func.func @transform_3(%arg0: i32) -> (i32, i32) {
    %c0_i32 = arith.constant 0 : i32
    %c0_i32_0 = arith.constant 0 : i32
    %c0_i32_1 = arith.constant 0 : i32
    return %c0_i32, %c0_i32_0 : i32, i32
  }
  func.func @transform_4(%arg0: i32) -> (i32, i32) {
    %c0_i32 = arith.constant 0 : i32
    %c0_i32_0 = arith.constant 0 : i32
    %c0_i32_1 = arith.constant 0 : i32
    return %c0_i32, %c0_i32_0 : i32, i32
  }
  func.func @transform_5(%arg0: i32) -> (i32, i32) {
    %c0_i32 = arith.constant 0 : i32
    %c0_i32_0 = arith.constant 0 : i32
    %c0_i32_1 = arith.constant 0 : i32
    return %c0_i32, %c0_i32_0 : i32, i32
  }
  func.func @transform_6(%arg0: i32) -> (i32, i32) {
    %c0_i32 = arith.constant 0 : i32
    %c0_i32_0 = arith.constant 0 : i32
    %c0_i32_1 = arith.constant 0 : i32
    return %c0_i32, %c0_i32_0 : i32, i32
  }
  func.func @transform_7(%arg0: i32) -> (i32, i32, i32) {
    %c0_i32 = arith.constant 0 : i32
    %c0_i32_0 = arith.constant 0 : i32
    %c0_i32_1 = arith.constant 0 : i32
    return %arg0, %c0_i32, %c0_i32_0 : i32, i32, i32
  }
}

</mosaic_0001>

<llo_original>
// kernel: binary_nn_forward.1
$region0: #{binary_nn_forward.1}
  #allocation0 [shape = 'u32[]', space=smem, size = 0x4, offset = 0x4, fixed_abs, tag = 'smem constant byte address 0x4 - core index']
  #allocation1 [shape = 'u32[144,128]{1,0:T(1,128)}', space=vmem, size = 0x12000, scoped, tag = 'internal scratch']
  #allocation2 [shape = 'f32[1,1]{1,0:T(1,128)S(1)}', space=vmem, size = 0x200, scoped, tag = 'scoped memory for binary_nn_forward.1']
  %s0 = inlined_call_operand.hbm [shape: f32[16,32], index: 0, kind: input, shape index: {}]
  %s1 = inlined_call_operand.hbm [shape: f32[32,64], index: 1, kind: input, shape index: {}]
  %s2 = inlined_call_operand.vmem [shape: f32[1,64], index: 2, kind: input, shape index: {}]
  %s3 = inlined_call_operand.hbm [shape: f32[64,64], index: 3, kind: input, shape index: {}]
  %s4 = inlined_call_operand.vmem [shape: f32[1,64], index: 4, kind: input, shape index: {}]
  %s5 = inlined_call_operand.vmem [shape: f32[1,64], index: 5, kind: input, shape index: {}]
  %s6 = inlined_call_operand.<no memory space> [shape: f32[1,1], index: 6, kind: input, shape index: {}]
  %s7 = inlined_call_operand.hbm [shape: f32[1,1,16], index: 7, kind: output, shape index: {}]
  %s8 = sld [smem:[#allocation0]]
  $region50: #{binary_nn_forward.1} parent=0
    _
  %s10 = ssub.s32 1, %s8
  %s11 = scalar_select 0, %s10, %s8
  %v12 = vstv %s6
  %13 = vst [vmem:[#allocation2] sm:$0x1] %v12
  $region1: #{binary_nn_forward.1} parent=0
    #allocation3 [shape = 'u8[8192]{0}', space=vmem, size = 0x2000, scoped, tag = 'input window, operand 0, single buffered']
    #allocation4 [shape = 's32[1]{0}', space=sflag, size = 0x4, scoped, tag = 'scoped memory for binary_nn_forward.1']
    #allocation5 [shape = 's32[1]{0}', space=sflag, size = 0x4, scoped, tag = 'scoped memory for binary_nn_forward.1']
    #allocation6 [shape = 'u8[16384]{0}', space=vmem, size = 0x4000, scoped, tag = 'input window, operand 1, single buffered']
    #allocation7 [shape = 's32[1]{0}', space=sflag, size = 0x4, scoped, tag = 'scoped memory for binary_nn_forward.1']
    #allocation8 [shape = 'u8[32768]{0}', space=vmem, size = 0x8000, scoped, tag = 'input window, operand 3, single buffered']
    #allocation9 [shape = 'u8[512]{0}', space=vmem, size = 0x400, scoped, tag = 'output window, operand 0, single buffered']
    %14 = vsyncpa [#allocation4], 0
    %15 = vsyncpa [#allocation7], 0
    %16 = vsyncpa [#allocation5], 0
    // Predicated region
    $region2: #{binary_nn_forward.1} parent=1 // pred_check
      _
    $region3: #{binary_nn_forward.1} parent=1 // pred_check_branch
      %18 = sbr.rel (0) target = $region5
    $region4: #{binary_nn_forward.1} parent=1 // pred_region
      %s20 = ssub.s32 256, 256
      %21 = vsyncadd [#allocation4], %s20
      %s22 = sshll.u32 [#allocation3], 4
      %s23 = int_to_ptr.vmem [resolvable:$true] %s22
      %28 = dma.hbm_to_vmem [thread:$0]  %s0, 256, %s23, [#allocation4], 128, 128, 8
    $region5: #{binary_nn_forward.1} parent=1 // pred_fallthru
      _
    // Predicated region
    $region6: #{binary_nn_forward.1} parent=1 // pred_check
      _
    $region7: #{binary_nn_forward.1} parent=1 // pred_check_branch
      %30 = sbr.rel (0) target = $region9
    $region8: #{binary_nn_forward.1} parent=1 // pred_region
      %s32 = ssub.s32 512, 512
      %33 = vsyncadd [#allocation7], %s32
      %s34 = sshll.u32 [#allocation6], 4
      %s35 = int_to_ptr.vmem [resolvable:$true] %s34
      %40 = dma.hbm_to_vmem [thread:$0]  %s1, 512, %s35, [#allocation7], 128, 128, 8
    $region9: #{binary_nn_forward.1} parent=1 // pred_fallthru
      _
    // Predicated region
    $region10: #{binary_nn_forward.1} parent=1 // pred_check
      _
    $region11: #{binary_nn_forward.1} parent=1 // pred_check_branch
      %42 = sbr.rel (0) target = $region13
    $region12: #{binary_nn_forward.1} parent=1 // pred_region
      _
    $region13: #{binary_nn_forward.1} parent=1 // pred_fallthru
      _
    // Predicated region
    $region14: #{binary_nn_forward.1} parent=1 // pred_check
      _
    $region15: #{binary_nn_forward.1} parent=1 // pred_check_branch
      %44 = sbr.rel (0) target = $region17
    $region16: #{binary_nn_forward.1} parent=1 // pred_region
      %s46 = ssub.s32 1024, 1024
      %47 = vsyncadd [#allocation7], %s46
      %s48 = sshll.u32 [#allocation8], 4
      %s49 = int_to_ptr.vmem [resolvable:$true] %s48
      %54 = dma.hbm_to_vmem [thread:$0]  %s3, 1024, %s49, [#allocation7], 128, 128, 8
    $region17: #{binary_nn_forward.1} parent=1 // pred_fallthru
      _
    // Predicated region
    $region18: #{binary_nn_forward.1} parent=1 // pred_check
      _
    $region19: #{binary_nn_forward.1} parent=1 // pred_check_branch
      %56 = sbr.rel (0) target = $region21
    $region20: #{binary_nn_forward.1} parent=1 // pred_region
      _
    $region21: #{binary_nn_forward.1} parent=1 // pred_fallthru
      _
    // Predicated region
    $region22: #{binary_nn_forward.1} parent=1 // pred_check
      _
    $region23: #{binary_nn_forward.1} parent=1 // pred_check_branch
      %58 = sbr.rel (0) target = $region25
    $region24: #{binary_nn_forward.1} parent=1 // pred_region
      _
    $region25: #{binary_nn_forward.1} parent=1 // pred_fallthru
      _
    // Predicated region
    $region26: #{binary_nn_forward.1} parent=1 // pred_check
      _
    $region27: #{binary_nn_forward.1} parent=1 // pred_check_branch
      %60 = sbr.rel (0) target = $region29
    $region28: #{binary_nn_forward.1} parent=1 // pred_region
      _
    $region29: #{binary_nn_forward.1} parent=1 // pred_fallthru
      _
    // Predicated region
    $region30: #{binary_nn_forward.1} parent=1 // pred_check
      _
    $region31: #{binary_nn_forward.1} parent=1 // pred_check_branch
      %62 = sbr.rel (0) target = $region33
    $region32: #{binary_nn_forward.1} parent=1 // pred_region
      %63 = dma.done [#allocation4], 256
    $region33: #{binary_nn_forward.1} parent=1 // pred_fallthru
      _
    // Predicated region
    $region34: #{binary_nn_forward.1} parent=1 // pred_check
      _
    $region35: #{binary_nn_forward.1} parent=1 // pred_check_branch
      %65 = sbr.rel (0) target = $region37
    $region36: #{binary_nn_forward.1} parent=1 // pred_region
      %66 = dma.done [#allocation7], 512
    $region37: #{binary_nn_forward.1} parent=1 // pred_fallthru
      _
    // Predicated region
    $region38: #{binary_nn_forward.1} parent=1 // pred_check
      _
    $region39: #{binary_nn_forward.1} parent=1 // pred_check_branch
      %68 = sbr.rel (0) target = $region41
    $region40: #{binary_nn_forward.1} parent=1 // pred_region
      %69 = dma.done [#allocation7], 1024
    $region41: #{binary_nn_forward.1} parent=1 // pred_fallthru
      _
    %v70 = vld [vmem:[#allocation3] sm:$0xff]
    %v71 = vld [vmem:[#allocation3 + $0x8] sm:$0xff]
    %v72 = vld [vmem:[#allocation6] sm:$0xff]
    %v73 = vld [vmem:[#allocation6 + $0x8] sm:$0xff]
    %v74 = vld [vmem:[#allocation6 + $0x10] sm:$0xff]
    %v75 = vld [vmem:[#allocation6 + $0x18] sm:$0xff]
    %v76 = vld [vmem:[%s2] sm:$0x1]
    %v78 = vlaneseq
    %v79 = vshrl.u32 %v78, 7
    %v80 = vsub.s32 0, %v79
    %v81 = vrot.slane %v76, %v80
    %vm83 = vcmask 261120
    %v85 = vsel %vm83, %v70, 0
    %v88 = vsel %vm83, %v71, 0
    %90 = vmatprep.subr.mxu0 0.0
    %91 = vmatpush1.msra.mxu0 %v72
    %92 = vmatprep.subr.mxu0 0.0
    %93 = vmatpush1.msra.mxu0 %v73
    %94 = vmatprep.subr.mxu0 0.0
    %95 = vmatpush1.msra.mxu0 %v74
    %96 = vmatprep.subr.mxu0 0.0
    %97 = vmatpush1.msra.mxu0 %v75
    %98 = vmatprep.subr.mxu0 0.0
    %99 = vmatpush1.msra.mxu0 0.0
    %100 = vmatprep.subr.mxu0 0.0
    %101 = vmatpush1.msra.mxu0 0.0
    %102 = vmatprep.subr.mxu0 0.0
    %103 = vmatpush1.msra.mxu0 0.0
    %104 = vmatprep.subr.mxu0 0.0
    %105 = vmatpush1.msra.mxu0 0.0
    %106 = vmatprep.subr.mxu0 0.0
    %107 = vmatpush1.msra.mxu0 0.0
    %108 = vmatprep.subr.mxu0 0.0
    %109 = vmatpush1.msra.mxu0 0.0
    %110 = vmatprep.subr.mxu0 0.0
    %111 = vmatpush1.msra.mxu0 0.0
    %112 = vmatprep.subr.mxu0 0.0
    %113 = vmatpush1.msra.mxu0 0.0
    %114 = vmatprep.subr.mxu0 0.0
    %115 = vmatpush1.msra.mxu0 0.0
    %116 = vmatprep.subr.mxu0 0.0
    %117 = vmatpush1.msra.mxu0 0.0
    %118 = vmatprep.subr.mxu0 0.0
    %119 = vmatpush1.msra.mxu0 0.0
    %120 = vmatprep.subr.mxu0 0.0
    %121 = vmatpush1.msra.mxu0 0.0
    %122 = vmatprep.subr.mxu0 0.0
    %123 = vmatpush1.msra.mxu0 0.0
    %124 = vmatprep.subr.mxu0 0.0
    %125 = vmatpush1.msra.mxu0 0.0
    %126 = vmatprep.subr.mxu0 0.0
    %127 = vmatpush1.msra.mxu0 0.0
    %128 = vmatprep.subr.mxu0 0.0
    %129 = vmatpush1.msra.mxu0 0.0
    %130 = vmatprep.subr.mxu0 0.0
    %131 = vmatpush1.msra.mxu0 0.0
    %132 = vmatprep.subr.mxu0 0.0
    %133 = vmatpush1.msra.mxu0 0.0
    %134 = vmatprep.subr.mxu0 0.0
    %135 = vmatpush1.msra.mxu0 0.0
    %136 = vmatprep.subr.mxu0 0.0
    %137 = vmatpush1.msra.mxu0 0.0
    %138 = vmatprep.subr.mxu0 0.0
    %139 = vmatpush1.msra.mxu0 0.0
    %140 = vmatprep.subr.mxu0 0.0
    %141 = vmatpush1.msra.mxu0 0.0
    %142 = vmatprep.subr.mxu0 0.0
    %143 = vmatpush1.msra.mxu0 0.0
    %144 = vmatprep.subr.mxu0 0.0
    %145 = vmatpush1.msra.mxu0 0.0
    %146 = vmatprep.subr.mxu0 0.0
    %147 = vmatpush1.msra.mxu0 0.0
    %148 = vmatprep.subr.mxu0 0.0
    %149 = vmatpush1.msra.mxu0 0.0
    %150 = vmatprep.subr.mxu0 0.0
    %151 = vmatpush1.msra.mxu0 0.0
    %152 = vmatprep.subr.mxu0 0.0
    %153 = vmatpush1.msra.mxu0 0.0
    %154 = vmatprep.mubr.f32.mxu0 0.0
    %155 = vmatmul.mubr.f32.gmra.mrb[0].mxu0 %v85
    %v156 = vpop.f32.mrb[0].mxu0
    %v157 = vadd.f32 %v81, %v156
    %v158 = vpop.f32.mrb[0].mxu0
    %159 = vmatprep.mubr.f32.mxu0 0.0
    %160 = vmatmul.mubr.f32.gmra.mrb[0].mxu0 %v88
    %v161 = vpop.f32.mrb[0].mxu0
    %v162 = vadd.f32 %v81, %v161
    %v163 = vpop.f32.mrb[0].mxu0
    %164 = vdwg.mxu0
    %v165 = vmax.f32 %v157, 0.0
    %v166 = vmax.f32 %v162, 0.0
    %v167 = vld [vmem:[#allocation8] sm:$0xff]
    %v168 = vld [vmem:[#allocation8 + $0x8] sm:$0xff]
    %v169 = vld [vmem:[#allocation8 + $0x10] sm:$0xff]
    %v170 = vld [vmem:[#allocation8 + $0x18] sm:$0xff]
    %v171 = vld [vmem:[#allocation8 + $0x20] sm:$0xff]
    %v172 = vld [vmem:[#allocation8 + $0x28] sm:$0xff]
    %v173 = vld [vmem:[#allocation8 + $0x30] sm:$0xff]
    %v174 = vld [vmem:[#allocation8 + $0x38] sm:$0xff]
    %v175 = vld [vmem:[%s4] sm:$0x1]
    %v177 = vlaneseq
    %v178 = vshrl.u32 %v177, 7
    %v179 = vsub.s32 0, %v178
    %v180 = vrot.slane %v175, %v179
    %vm182 = vcmask 523264
    %v184 = vsel %vm182, %v165, 0
    %v187 = vsel %vm182, %v166, 0
    %189 = vmatprep.subr.mxu0 0.0
    %190 = vmatpush1.msra.mxu0 %v167
    %191 = vmatprep.subr.mxu0 0.0
    %192 = vmatpush1.msra.mxu0 %v168
    %193 = vmatprep.subr.mxu0 0.0
    %194 = vmatpush1.msra.mxu0 %v169
    %195 = vmatprep.subr.mxu0 0.0
    %196 = vmatpush1.msra.mxu0 %v170
    %197 = vmatprep.subr.mxu0 0.0
    %198 = vmatpush1.msra.mxu0 %v171
    %199 = vmatprep.subr.mxu0 0.0
    %200 = vmatpush1.msra.mxu0 %v172
    %201 = vmatprep.subr.mxu0 0.0
    %202 = vmatpush1.msra.mxu0 %v173
    %203 = vmatprep.subr.mxu0 0.0
    %204 = vmatpush1.msra.mxu0 %v174
    %205 = vmatprep.subr.mxu0 0.0
    %206 = vmatpush1.msra.mxu0 0.0
    %207 = vmatprep.subr.mxu0 0.0
    %208 = vmatpush1.msra.mxu0 0.0
    %209 = vmatprep.subr.mxu0 0.0
    %210 = vmatpush1.msra.mxu0 0.0
    %211 = vmatprep.subr.mxu0 0.0
    %212 = vmatpush1.msra.mxu0 0.0
    %213 = vmatprep.subr.mxu0 0.0
    %214 = vmatpush1.msra.mxu0 0.0
    %215 = vmatprep.subr.mxu0 0.0
    %216 = vmatpush1.msra.mxu0 0.0
    %217 = vmatprep.subr.mxu0 0.0
    %218 = vmatpush1.msra.mxu0 0.0
    %219 = vmatprep.subr.mxu0 0.0
    %220 = vmatpush1.msra.mxu0 0.0
    %221 = vmatprep.subr.mxu0 0.0
    %222 = vmatpush1.msra.mxu0 0.0
    %223 = vmatprep.subr.mxu0 0.0
    %224 = vmatpush1.msra.mxu0 0.0
    %225 = vmatprep.subr.mxu0 0.0
    %226 = vmatpush1.msra.mxu0 0.0
    %227 = vmatprep.subr.mxu0 0.0
    %228 = vmatpush1.msra.mxu0 0.0
    %229 = vmatprep.subr.mxu0 0.0
    %230 = vmatpush1.msra.mxu0 0.0
    %231 = vmatprep.subr.mxu0 0.0
    %232 = vmatpush1.msra.mxu0 0.0
    %233 = vmatprep.subr.mxu0 0.0
    %234 = vmatpush1.msra.mxu0 0.0
    %235 = vmatprep.subr.mxu0 0.0
    %236 = vmatpush1.msra.mxu0 0.0
    %237 = vmatprep.subr.mxu0 0.0
    %238 = vmatpush1.msra.mxu0 0.0
    %239 = vmatprep.subr.mxu0 0.0
    %240 = vmatpush1.msra.mxu0 0.0
    %241 = vmatprep.subr.mxu0 0.0
    %242 = vmatpush1.msra.mxu0 0.0
    %243 = vmatprep.subr.mxu0 0.0
    %244 = vmatpush1.msra.mxu0 0.0
    %245 = vmatprep.subr.mxu0 0.0
    %246 = vmatpush1.msra.mxu0 0.0
    %247 = vmatprep.subr.mxu0 0.0
    %248 = vmatpush1.msra.mxu0 0.0
    %249 = vmatprep.subr.mxu0 0.0
    %250 = vmatpush1.msra.mxu0 0.0
    %251 = vmatprep.subr.mxu0 0.0
    %252 = vmatpush1.msra.mxu0 0.0
    %253 = vmatprep.mubr.f32.mxu0 0.0
    %254 = vmatmul.mubr.f32.gmra.mrb[0].mxu0 %v184
    %v255 = vpop.f32.mrb[0].mxu0
    %v256 = vadd.f32 %v180, %v255
    %v257 = vpop.f32.mrb[0].mxu0
    %258 = vmatprep.mubr.f32.mxu0 0.0
    %259 = vmatmul.mubr.f32.gmra.mrb[0].mxu0 %v187
    %v260 = vpop.f32.mrb[0].mxu0
    %v261 = vadd.f32 %v180, %v260
    %v262 = vpop.f32.mrb[0].mxu0
    %263 = vdwg.mxu0
    %v264 = vmax.f32 %v256, 0.0
    %v265 = vmax.f32 %v261, 0.0
    %v266 = vld [vmem:[%s5] sm:$0x1]
    %v268 = vlaneseq
    %v269 = vshrl.u32 %v268, 7
    %v270 = vsub.s32 0, %v269
    %v271 = vrot.slane %v266, %v270
    %v273 = vmul.f32 %v264, %v271
    %v274 = vmul.f32 %v265, %v271
    %v275 = vsel %vm182, %v273, 0.0
    %276 = vadd.xlane.f32.xlu0 %v275
    %v277 = vpop.xlane.xlu0 %276
    %v278 = vsel %vm182, %v274, 0.0
    %279 = vadd.xlane.f32.xlu0 %v278
    %v280 = vpop.xlane.xlu0 %279
    %v281 = vld [vmem:[#allocation2] sm:$0x1]
    %283 = vset.pattern.permute.xlu0 0
    %284 = vperm.xlu0 %283, %v281
    %v285 = vpop.permute.xlu0 %284
    %v287 = vlaneseq
    %v288 = vshrl.u32 %v287, 7
    %v289 = vsub.s32 0, %v288
    %v290 = vrot.slane %v285, %v289
    %v291 = vadd.f32 %v277, %v290
    %v292 = vadd.f32 %v280, %v290
    %v295 = vlaneseq
    %v296 = vand.u32 %v295, 127
    %v297 = vlaneseq
    %v298 = vshrl.u32 %v297, 7
    %v299 = vsub.s32 %v296, %v298
    %v300 = vrot.slane %v291, %v299
    %v301 = vadd.s32 %v296, 4294967288
    %v302 = vlaneseq
    %v303 = vshrl.u32 %v302, 7
    %v304 = vsub.s32 %v301, %v303
    %v305 = vrot.slane %v292, %v304
    %vm306 = vcmask 130112
    %v307 = vsel %vm306, %v305, %v300
    %vm309 = vcmask 122880
    %310 = vst.msk [vmem:[#allocation9] sm:$0x1] %vm309, %v307
    // Predicated region
    $region42: #{binary_nn_forward.1} parent=1 // pred_check
      _
    $region43: #{binary_nn_forward.1} parent=1 // pred_check_branch
      %312 = sbr.rel (0) target = $region45
    $region44: #{binary_nn_forward.1} parent=1 // pred_region
      %s314 = ssub.s32 16, 16
      %315 = vsyncadd [#allocation5], %s314
      %s317 = sshll.u32 [#allocation9], 4
      %s318 = int_to_ptr.vmem [resolvable:$true] %s317
      %320 = dma.vmem_to_hbm [thread:$0]  %s318, 16, %s7, [#allocation5]
    $region45: #{binary_nn_forward.1} parent=1 // pred_fallthru
      _
    // Predicated region
    $region46: #{binary_nn_forward.1} parent=1 // pred_check
      _
    $region47: #{binary_nn_forward.1} parent=1 // pred_check_branch
      %322 = sbr.rel (0) target = $region49
    $region48: #{binary_nn_forward.1} parent=1 // pred_region
      %323 = dma.done [#allocation5], 16
    $region49: #{binary_nn_forward.1} parent=1 // pred_fallthru
      _
    %324 = vsyncpa [#allocation4], 1
    %325 = vsyncpa [#allocation7], 1
    %326 = vsyncpa [#allocation5], 1

</llo_original>
